<compile_context>
chip_gen: v7x
topology: tpu7x:2x2x1
jax: 0.10.0
libtpu: 0.0.40
codegen_flags: <defaults>
</compile_context>

<pallas_src>
import functools

import jax
import jax.numpy as jnp
from jax import lax
from jax.experimental import pallas as pl
from jax.experimental.pallas import tpu as pltpu


# x / max(||x||, 1e-12)  ==  x * rsqrt(max(||x||^2, 1e-24))
_EPS_SQ = 1e-24


def _round_up(x, m):
    return ((x + m - 1) // m) * m


def _norm_scale(x, w):
    """w * F.normalize(x, p=2, dim=-1) for an f32 (rows, Dp) tile (rsqrt -> EUP)."""
    ss = jnp.sum(x * x, axis=-1, keepdims=True)
    return x * (w * lax.rsqrt(jnp.maximum(ss, _EPS_SQ)))


# ---------------------------------------------------------------------------
# Small-N path: one grid=() kernel, everything VMEM-resident, fully fused.
# ---------------------------------------------------------------------------
def _fused_small_kernel(a_ref, adj_ref, emb_ref, out_ref, *, layers):
    adj = adj_ref[...]                       # (Np, Np) bf16, VMEM resident
    cur = emb_ref[...]                       # (Np, Dp) f32, VMEM resident
    acc = _norm_scale(cur, a_ref[0])
    for h in range(layers):                  # static unroll, small layer count
        cur = jnp.dot(adj, cur.astype(jnp.bfloat16),
                      preferred_element_type=jnp.float32)
        acc = acc + _norm_scale(cur, a_ref[h + 1])
    out_ref[...] = acc.astype(out_ref.dtype)


def _session_conv_small(a, adj_bf16, emb_f32, *, layers, out_dtype):
    Np, Dp = emb_f32.shape
    return pl.pallas_call(
        functools.partial(_fused_small_kernel, layers=layers),
        out_shape=jax.ShapeDtypeStruct((Np, Dp), out_dtype),
        in_specs=[
            pl.BlockSpec(memory_space=pltpu.MemorySpace.SMEM),   # a: (L+1,)
            pl.BlockSpec(memory_space=pltpu.MemorySpace.VMEM),   # adjacency
            pl.BlockSpec(memory_space=pltpu.MemorySpace.VMEM),   # embedding
        ],
        out_specs=pl.BlockSpec(memory_space=pltpu.MemorySpace.VMEM),
        compiler_params=pltpu.CompilerParams(
            vmem_limit_bytes=32 * 1024 * 1024),
    )(a, adj_bf16, emb_f32)


# ---------------------------------------------------------------------------
# Large-N path: per hop, grid over row tiles only (K axis collapsed), with
# L2-normalize + a[i] scaling + weighted sum fused into the hop epilogue.
# ---------------------------------------------------------------------------
def _hop_fused_kernel(a_ref, adj_ref, cur_ref, acc_ref,
                      next_ref, acc_out_ref, *, hop_idx, tm):
    # adj_ref : (tm, Np) bf16 row slab, streamed / double-buffered
    # cur_ref : (Np, Dp) f32 full embedding, VMEM resident (constant index_map)
    i = pl.program_id(0)

    nxt = jnp.dot(adj_ref[...], cur_ref[...].astype(jnp.bfloat16),
                  preferred_element_type=jnp.float32)            # (tm, Dp) f32
    next_ref[...] = nxt

    acc = acc_ref[...]
    if hop_idx == 0:
        # Fold the term-0 (raw E) contribution into the first hop's epilogue,
        # using this row tile of the resident cur block.
        row0 = pl.multiple_of(i * tm, tm)
        acc = acc + _norm_scale(cur_ref[pl.ds(row0, tm), :], a_ref[0])
    acc_out_ref[...] = acc + _norm_scale(nxt, a_ref[hop_idx + 1])


def _hop_fused(a, adj_bf16, cur_f32, acc_f32, *, hop_idx, tm, vmem_bytes):
    Np, Dp = cur_f32.shape
    return pl.pallas_call(
        functools.partial(_hop_fused_kernel, hop_idx=hop_idx, tm=tm),
        out_shape=(jax.ShapeDtypeStruct((Np, Dp), jnp.float32),   # next hop input
                   jax.ShapeDtypeStruct((Np, Dp), jnp.float32)),  # running weighted sum
        grid_spec=pltpu.PrefetchScalarGridSpec(
            num_scalar_prefetch=0,
            grid=(Np // tm,),
            in_specs=[
                pl.BlockSpec(memory_space=pltpu.MemorySpace.SMEM),  # a: (L+1,)
                pl.BlockSpec((tm, Np), lambda i: (i, 0)),           # adjacency row slab
                pl.BlockSpec((Np, Dp), lambda i: (0, 0)),           # cur: fully resident
                pl.BlockSpec((tm, Dp), lambda i: (i, 0)),           # acc (in)
            ],
            out_specs=[
                pl.BlockSpec((tm, Dp), lambda i: (i, 0)),           # next
                pl.BlockSpec((tm, Dp), lambda i: (i, 0)),           # acc (out)
            ],
        ),
        input_output_aliases={3: 1},    # acc carried in place across hops
        compiler_params=pltpu.CompilerParams(
            dimension_semantics=("parallel",),   # row tiles -> megacore / v7x 2 TCs
            vmem_limit_bytes=vmem_bytes,
        ),
    )(a, adj_bf16, cur_f32, acc_f32)


# ---------------------------------------------------------------------------
# SessionConv forward
# ---------------------------------------------------------------------------
@functools.partial(jax.jit, static_argnames=("layers",))
def session_conv(adjacency, embedding, a, *, layers):
    """adjacency: (N, N) dense (densified sparse adj), embedding: (N, D), a: (layers+1,)."""
    N, D = embedding.shape
    assert adjacency.shape == (N, N)
    assert a.shape == (layers + 1,)

    Dp = _round_up(D, 128)                   # lane-dense feature dim
    a_f32 = a.astype(jnp.float32)
    out_dtype = embedding.dtype

    # ---- small-N fully fused path: one launch, everything VMEM-resident ----
    if _round_up(N, 128) <= 512:
        Np = _round_up(N, 128)
        adj_p = jnp.pad(adjacency.astype(jnp.bfloat16),
                        ((0, Np - N), (0, Np - N)))
        emb_p = jnp.pad(embedding.astype(jnp.float32),
                        ((0, Np - N), (0, Dp - D)))
        out_p = _session_conv_small(a_f32, adj_p, emb_p,
                                    layers=layers, out_dtype=out_dtype)
        return out_p[:N, :D]

    # ---- large-N path: tiled hops with fused normalize / weighted sum ----
    assert layers >= 1, "large-N path assumes at least one graph-conv hop"

    # Row-tile size: 256 unless the double-buffered (tm, Np) bf16 adjacency
    # slab gets too big; rows padded only to tm (no 512 padding granularity).
    tm = 256
    if 2 * tm * _round_up(N, tm) * 2 > 24 * 1024 * 1024:
        tm = 128
    Np = _round_up(N, tm)

    # VMEM budget: double-buffered adjacency slab + resident cur + small tiles,
    # with headroom, clamped below v7x's 64 MiB physical VMEM.
    vmem_bytes = (2 * tm * Np * 2          # adjacency slab (bf16, 2 buffers)
                  + 2 * Np * Dp * 4        # resident cur (f32, counted 2x)
                  + 8 * tm * Dp * 4        # next / acc tiles (double-buffered)
                  + (4 << 20))             # headroom
    vmem_bytes = int(min(max(vmem_bytes, 32 * 1024 * 1024), 56 * 1024 * 1024))

    adj_p = jnp.pad(adjacency.astype(jnp.bfloat16), ((0, Np - N), (0, Np - N)))
    cur = jnp.pad(embedding.astype(jnp.float32), ((0, Np - N), (0, Dp - D)))
    acc = jnp.zeros((Np, Dp), jnp.float32)

    for h in range(layers):
        cur, acc = _hop_fused(a_f32, adj_p, cur, acc,
                              hop_idx=h, tm=tm, vmem_bytes=vmem_bytes)

    return acc[:N, :D].astype(out_dtype)


def session_conv_ref(adjacency, embedding, a, *, layers):
    """Pure-JAX f32 reference for verification."""
    adj = adjacency.astype(jnp.float32)
    cur = embedding.astype(jnp.float32)
    final = [cur]
    for _ in range(layers):
        cur = adj @ cur
        final.append(cur)
    final = jnp.stack(final, axis=0)
    norm = jnp.sqrt(jnp.sum(final * final, axis=-1, keepdims=True))
    final = final / jnp.maximum(norm, 1e-12)
    return jnp.sum(a[:, None, None] * final, axis=0)


if __name__ == "__main__":
    LAYERS = 2

    def _run_case(n_nodes, emb_dim, layers):
        key = jax.random.PRNGKey(0)
        k_adj, k_emb = jax.random.split(key)

        # dense stand-in for the (row-normalized) sparse session adjacency
        adjacency = jax.random.uniform(k_adj, (n_nodes, n_nodes), dtype=jnp.float32)
        adjacency = adjacency / jnp.sum(adjacency, axis=-1, keepdims=True)
        embedding = jax.random.normal(k_emb, (n_nodes, emb_dim), dtype=jnp.float32)

        # parameter `a` = nn.Parameter(ones(layers+1, 1, 1)) -> flattened to (L+1,)
        a = jnp.ones((layers + 1,), dtype=jnp.float32)

        out = session_conv(adjacency, embedding, a, layers=layers)
        out = jax.block_until_ready(out)

        ref = session_conv_ref(adjacency, embedding, a, layers=layers)
        assert out.shape == (n_nodes, emb_dim)
        # bf16 MXU operands (f32 accumulate, f32 inter-hop) vs the f32 reference.
        assert jnp.allclose(out, ref, atol=2e-2, rtol=2e-2), (
            float(jnp.max(jnp.abs(out - ref))))

    _run_case(200, 100, LAYERS)    # small path: single fused grid=() kernel
    _run_case(1000, 100, LAYERS)   # large path: tiled hops + fused epilogue

    print("KERNEL_OK")
</pallas_src>

<mosaic_0001>
module attributes {stable_mosaic.version = 11 : i64} {
  func.func @_fused_small_kernel(%arg0: memref<3xf32, #tpu.memory_space<smem>>, %arg1: memref<256x256xbf16, #tpu.memory_space<vmem>>, %arg2: memref<256x128xf32, #tpu.memory_space<vmem>>, %arg3: memref<256x128xf32, #tpu.memory_space<vmem>>) attributes {dimension_semantics = [], scalar_prefetch = 0 : i64, scratch_operands = 0 : i64, tpu.core_type = #tpu.core_type<tc>} {
    %c0 = arith.constant 0 : index
    %c0_0 = arith.constant 0 : index
    %0 = vector.load %arg1[%c0, %c0_0] : memref<256x256xbf16, #tpu.memory_space<vmem>>, vector<256x256xbf16>
    %c0_1 = arith.constant 0 : index
    %c0_2 = arith.constant 0 : index
    %1 = vector.load %arg2[%c0_1, %c0_2] : memref<256x128xf32, #tpu.memory_space<vmem>>, vector<256x128xf32>
    %c0_3 = arith.constant 0 : index
    %2 = memref.load %arg0[%c0_3] : memref<3xf32, #tpu.memory_space<smem>>
    %3 = arith.mulf %1, %1 : vector<256x128xf32>
    %cst = arith.constant dense<0.000000e+00> : vector<256xf32>
    %4 = vector.multi_reduction <add>, %3, %cst [1] : vector<256x128xf32> to vector<256xf32>
    %5 = vector.shape_cast %4 : vector<256xf32> to vector<256x1xf32>
    %cst_4 = arith.constant 1.000000e-24 : f32
    %6 = vector.broadcast %cst_4 : f32 to vector<256x1xf32>
    %7 = arith.maximumf %5, %6 : vector<256x1xf32>
    %8 = math.rsqrt %7 : vector<256x1xf32>
    %9 = vector.broadcast %2 : f32 to vector<256x1xf32>
    %10 = arith.mulf %9, %8 : vector<256x1xf32>
    %11 = vector.broadcast %10 : vector<256x1xf32> to vector<256x128xf32>
    %12 = arith.mulf %1, %11 : vector<256x128xf32>
    %13 = arith.truncf %1 : vector<256x128xf32> to vector<256x128xbf16>
    %cst_5 = arith.constant dense<0.000000e+00> : vector<256x128xf32>
    %14 = tpu.matmul %0, %13, %cst_5 {dimension_numbers = #tpu.dot_dimension_numbers<[1], [0], [0], [1], [0, 0, 1, 1], [], []>} : vector<256x256xbf16>, vector<256x128xbf16>, vector<256x128xf32> -> vector<256x128xf32>
    %c1 = arith.constant 1 : index
    %15 = memref.load %arg0[%c1] : memref<3xf32, #tpu.memory_space<smem>>
    %16 = arith.mulf %14, %14 : vector<256x128xf32>
    %cst_6 = arith.constant dense<0.000000e+00> : vector<256xf32>
    %17 = vector.multi_reduction <add>, %16, %cst_6 [1] : vector<256x128xf32> to vector<256xf32>
    %18 = vector.shape_cast %17 : vector<256xf32> to vector<256x1xf32>
    %cst_7 = arith.constant 1.000000e-24 : f32
    %19 = vector.broadcast %cst_7 : f32 to vector<256x1xf32>
    %20 = arith.maximumf %18, %19 : vector<256x1xf32>
    %21 = math.rsqrt %20 : vector<256x1xf32>
    %22 = vector.broadcast %15 : f32 to vector<256x1xf32>
    %23 = arith.mulf %22, %21 : vector<256x1xf32>
    %24 = vector.broadcast %23 : vector<256x1xf32> to vector<256x128xf32>
    %25 = arith.mulf %14, %24 : vector<256x128xf32>
    %26 = arith.addf %12, %25 : vector<256x128xf32>
    %27 = arith.truncf %14 : vector<256x128xf32> to vector<256x128xbf16>
    %cst_8 = arith.constant dense<0.000000e+00> : vector<256x128xf32>
    %28 = tpu.matmul %0, %27, %cst_8 {dimension_numbers = #tpu.dot_dimension_numbers<[1], [0], [0], [1], [0, 0, 1, 1], [], []>} : vector<256x256xbf16>, vector<256x128xbf16>, vector<256x128xf32> -> vector<256x128xf32>
    %c2 = arith.constant 2 : index
    %29 = memref.load %arg0[%c2] : memref<3xf32, #tpu.memory_space<smem>>
    %30 = arith.mulf %28, %28 : vector<256x128xf32>
    %cst_9 = arith.constant dense<0.000000e+00> : vector<256xf32>
    %31 = vector.multi_reduction <add>, %30, %cst_9 [1] : vector<256x128xf32> to vector<256xf32>
    %32 = vector.shape_cast %31 : vector<256xf32> to vector<256x1xf32>
    %cst_10 = arith.constant 1.000000e-24 : f32
    %33 = vector.broadcast %cst_10 : f32 to vector<256x1xf32>
    %34 = arith.maximumf %32, %33 : vector<256x1xf32>
    %35 = math.rsqrt %34 : vector<256x1xf32>
    %36 = vector.broadcast %29 : f32 to vector<256x1xf32>
    %37 = arith.mulf %36, %35 : vector<256x1xf32>
    %38 = vector.broadcast %37 : vector<256x1xf32> to vector<256x128xf32>
    %39 = arith.mulf %28, %38 : vector<256x128xf32>
    %40 = arith.addf %26, %39 : vector<256x128xf32>
    %c0_11 = arith.constant 0 : index
    %c0_12 = arith.constant 0 : index
    %41 = vector.load %arg3[%c0_11, %c0_12] : memref<256x128xf32, #tpu.memory_space<vmem>>, vector<256x128xf32>
    tpu.vector_store %arg3[%c0_11, %c0_12], %40 {strides = array<i32>} : memref<256x128xf32, #tpu.memory_space<vmem>>, vector<256x128xf32>,
    return
  }
}

</mosaic_0001>

<llo_original>
// kernel: session_conv.1
$region0: #{session_conv.1}
  #allocation0 [shape = 'u32[]', space=smem, size = 0x4, offset = 0x4, fixed_abs, tag = 'smem constant byte address 0x4 - core index']
  #allocation1 [shape = 'u32[144,128]{1,0:T(1,128)}', space=vmem, size = 0x12000, scoped, tag = 'internal scratch']
  %s0 = inlined_call_operand.vmem [shape: f32[3], index: 0, kind: input, shape index: {}]
  %s1 = inlined_call_operand.vmem [shape: bf16[256,256], index: 1, kind: input, shape index: {}]
  %s2 = inlined_call_operand.vmem [shape: f32[256,128], index: 2, kind: input, shape index: {}]
  %s3 = inlined_call_operand.vmem [shape: f32[256,128], index: 3, kind: output, shape index: {}]
  %s4 = sld [smem:[#allocation0]]
  $region26: #{session_conv.1} parent=0
    _
  %s6 = ssub.s32 1, %s4
  %s7 = scalar_select 0, %s6, %s4
  $region1: #{session_conv.1} parent=0
    #allocation2 [shape = 'u8[512]{0}', space=smem, size = 0x200, scoped, tag = 'input window, operand 0, single buffered']
    #allocation3 [shape = 's32[1]{0}', space=sflag, size = 0x4, scoped, tag = 'scoped memory for session_conv.1']
    %8 = vsyncpa [#allocation3], 0
    // Predicated region
    $region2: #{session_conv.1} parent=1 // pred_check
      _
    $region3: #{session_conv.1} parent=1 // pred_check_branch
      %10 = sbr.rel (0) target = $region5
    $region4: #{session_conv.1} parent=1 // pred_region
      %s12 = ssub.s32 16, 16
      %13 = vsyncadd [#allocation3], %s12
      %s15 = sshll.u32 %s0, 4
      %s16 = int_to_ptr.vmem [resolvable:$true] %s15
      %18 = dma.vmem_to_smem %s16, 16, [#allocation2], [#allocation3]
    $region5: #{session_conv.1} parent=1 // pred_fallthru
      _
    // Predicated region
    $region6: #{session_conv.1} parent=1 // pred_check
      _
    $region7: #{session_conv.1} parent=1 // pred_check_branch
      %20 = sbr.rel (0) target = $region9
    $region8: #{session_conv.1} parent=1 // pred_region
      _
    $region9: #{session_conv.1} parent=1 // pred_fallthru
      _
    // Predicated region
    $region10: #{session_conv.1} parent=1 // pred_check
      _
    $region11: #{session_conv.1} parent=1 // pred_check_branch
      %22 = sbr.rel (0) target = $region13
    $region12: #{session_conv.1} parent=1 // pred_region
      _
    $region13: #{session_conv.1} parent=1 // pred_fallthru
      _
    // Predicated region
    $region14: #{session_conv.1} parent=1 // pred_check
      _
    $region15: #{session_conv.1} parent=1 // pred_check_branch
      %24 = sbr.rel (0) target = $region17
    $region16: #{session_conv.1} parent=1 // pred_region
      %25 = dma.done [#allocation3], 16
    $region17: #{session_conv.1} parent=1 // pred_fallthru
      _
    %26 = sfence
    %v28 = vld [vmem:[%s1] sm:$0xff]
    %v29 = vld [vmem:[%s1 + $0x8] sm:$0xff]
    %v30 = vld [vmem:[%s1 + $0x10] sm:$0xff]
    %v31 = vld [vmem:[%s1 + $0x18] sm:$0xff]
    %v32 = vld [vmem:[%s1 + $0x20] sm:$0xff]
    %v33 = vld [vmem:[%s1 + $0x28] sm:$0xff]
    %v34 = vld [vmem:[%s1 + $0x30] sm:$0xff]
    %v35 = vld [vmem:[%s1 + $0x38] sm:$0xff]
    %v36 = vld [vmem:[%s1 + $0x40] sm:$0xff]
    %v37 = vld [vmem:[%s1 + $0x48] sm:$0xff]
    %v38 = vld [vmem:[%s1 + $0x50] sm:$0xff]
    %v39 = vld [vmem:[%s1 + $0x58] sm:$0xff]
    %v40 = vld [vmem:[%s1 + $0x60] sm:$0xff]
    %v41 = vld [vmem:[%s1 + $0x68] sm:$0xff]
    %v42 = vld [vmem:[%s1 + $0x70] sm:$0xff]
    %v43 = vld [vmem:[%s1 + $0x78] sm:$0xff]
    %v44 = vld [vmem:[%s1 + $0x80] sm:$0xff]
    %v45 = vld [vmem:[%s1 + $0x88] sm:$0xff]
    %v46 = vld [vmem:[%s1 + $0x90] sm:$0xff]
    %v47 = vld [vmem:[%s1 + $0x98] sm:$0xff]
    %v48 = vld [vmem:[%s1 + $0xa0] sm:$0xff]
    %v49 = vld [vmem:[%s1 + $0xa8] sm:$0xff]
    %v50 = vld [vmem:[%s1 + $0xb0] sm:$0xff]
    %v51 = vld [vmem:[%s1 + $0xb8] sm:$0xff]
    %v52 = vld [vmem:[%s1 + $0xc0] sm:$0xff]
    %v53 = vld [vmem:[%s1 + $0xc8] sm:$0xff]
    %v54 = vld [vmem:[%s1 + $0xd0] sm:$0xff]
    %v55 = vld [vmem:[%s1 + $0xd8] sm:$0xff]
    %v56 = vld [vmem:[%s1 + $0xe0] sm:$0xff]
    %v57 = vld [vmem:[%s1 + $0xe8] sm:$0xff]
    %v58 = vld [vmem:[%s1 + $0xf0] sm:$0xff]
    %v59 = vld [vmem:[%s1 + $0xf8] sm:$0xff]
    %v60 = vld [vmem:[%s2] sm:$0xff]
    %v61 = vld [vmem:[%s2 + $0x8] sm:$0xff]
    %v62 = vld [vmem:[%s2 + $0x10] sm:$0xff]
    %v63 = vld [vmem:[%s2 + $0x18] sm:$0xff]
    %v64 = vld [vmem:[%s2 + $0x20] sm:$0xff]
    %v65 = vld [vmem:[%s2 + $0x28] sm:$0xff]
    %v66 = vld [vmem:[%s2 + $0x30] sm:$0xff]
    %v67 = vld [vmem:[%s2 + $0x38] sm:$0xff]
    %v68 = vld [vmem:[%s2 + $0x40] sm:$0xff]
    %v69 = vld [vmem:[%s2 + $0x48] sm:$0xff]
    %v70 = vld [vmem:[%s2 + $0x50] sm:$0xff]
    %v71 = vld [vmem:[%s2 + $0x58] sm:$0xff]
    %v72 = vld [vmem:[%s2 + $0x60] sm:$0xff]
    %v73 = vld [vmem:[%s2 + $0x68] sm:$0xff]
    %v74 = vld [vmem:[%s2 + $0x70] sm:$0xff]
    %v75 = vld [vmem:[%s2 + $0x78] sm:$0xff]
    %v76 = vld [vmem:[%s2 + $0x80] sm:$0xff]
    %v77 = vld [vmem:[%s2 + $0x88] sm:$0xff]
    %v78 = vld [vmem:[%s2 + $0x90] sm:$0xff]
    %v79 = vld [vmem:[%s2 + $0x98] sm:$0xff]
    %v80 = vld [vmem:[%s2 + $0xa0] sm:$0xff]
    %v81 = vld [vmem:[%s2 + $0xa8] sm:$0xff]
    %v82 = vld [vmem:[%s2 + $0xb0] sm:$0xff]
    %v83 = vld [vmem:[%s2 + $0xb8] sm:$0xff]
    %v84 = vld [vmem:[%s2 + $0xc0] sm:$0xff]
    %v85 = vld [vmem:[%s2 + $0xc8] sm:$0xff]
    %v86 = vld [vmem:[%s2 + $0xd0] sm:$0xff]
    %v87 = vld [vmem:[%s2 + $0xd8] sm:$0xff]
    %v88 = vld [vmem:[%s2 + $0xe0] sm:$0xff]
    %v89 = vld [vmem:[%s2 + $0xe8] sm:$0xff]
    %v90 = vld [vmem:[%s2 + $0xf0] sm:$0xff]
    %v91 = vld [vmem:[%s2 + $0xf8] sm:$0xff]
    %s92 = sld [smem:[#allocation2]]
    %v93 = vmul.f32 %v60, %v60
    %v94 = vmul.f32 %v61, %v61
    %v95 = vmul.f32 %v62, %v62
    %v96 = vmul.f32 %v63, %v63
    %v97 = vmul.f32 %v64, %v64
    %v98 = vmul.f32 %v65, %v65
    %v99 = vmul.f32 %v66, %v66
    %v100 = vmul.f32 %v67, %v67
    %v101 = vmul.f32 %v68, %v68
    %v102 = vmul.f32 %v69, %v69
    %v103 = vmul.f32 %v70, %v70
    %v104 = vmul.f32 %v71, %v71
    %v105 = vmul.f32 %v72, %v72
    %v106 = vmul.f32 %v73, %v73
    %v107 = vmul.f32 %v74, %v74
    %v108 = vmul.f32 %v75, %v75
    %v109 = vmul.f32 %v76, %v76
    %v110 = vmul.f32 %v77, %v77
    %v111 = vmul.f32 %v78, %v78
    %v112 = vmul.f32 %v79, %v79
    %v113 = vmul.f32 %v80, %v80
    %v114 = vmul.f32 %v81, %v81
    %v115 = vmul.f32 %v82, %v82
    %v116 = vmul.f32 %v83, %v83
    %v117 = vmul.f32 %v84, %v84
    %v118 = vmul.f32 %v85, %v85
    %v119 = vmul.f32 %v86, %v86
    %v120 = vmul.f32 %v87, %v87
    %v121 = vmul.f32 %v88, %v88
    %v122 = vmul.f32 %v89, %v89
    %v123 = vmul.f32 %v90, %v90
    %v124 = vmul.f32 %v91, %v91
    %125 = vadd.xlane.f32.xlu0 %v93
    %v126 = vpop.xlane.xlu0 %125
    %127 = vadd.xlane.f32.xlu0 %v94
    %v128 = vpop.xlane.xlu0 %127
    %129 = vadd.xlane.f32.xlu0 %v95
    %v130 = vpop.xlane.xlu0 %129
    %131 = vadd.xlane.f32.xlu0 %v96
    %v132 = vpop.xlane.xlu0 %131
    %133 = vadd.xlane.f32.xlu0 %v97
    %v134 = vpop.xlane.xlu0 %133
    %135 = vadd.xlane.f32.xlu0 %v98
    %v136 = vpop.xlane.xlu0 %135
    %137 = vadd.xlane.f32.xlu0 %v99
    %v138 = vpop.xlane.xlu0 %137
    %139 = vadd.xlane.f32.xlu0 %v100
    %v140 = vpop.xlane.xlu0 %139
    %141 = vadd.xlane.f32.xlu0 %v101
    %v142 = vpop.xlane.xlu0 %141
    %143 = vadd.xlane.f32.xlu0 %v102
    %v144 = vpop.xlane.xlu0 %143
    %145 = vadd.xlane.f32.xlu0 %v103
    %v146 = vpop.xlane.xlu0 %145
    %147 = vadd.xlane.f32.xlu0 %v104
    %v148 = vpop.xlane.xlu0 %147
    %149 = vadd.xlane.f32.xlu0 %v105
    %v150 = vpop.xlane.xlu0 %149
    %151 = vadd.xlane.f32.xlu0 %v106
    %v152 = vpop.xlane.xlu0 %151
    %153 = vadd.xlane.f32.xlu0 %v107
    %v154 = vpop.xlane.xlu0 %153
    %155 = vadd.xlane.f32.xlu0 %v108
    %v156 = vpop.xlane.xlu0 %155
    %157 = vadd.xlane.f32.xlu0 %v109
    %v158 = vpop.xlane.xlu0 %157
    %159 = vadd.xlane.f32.xlu0 %v110
    %v160 = vpop.xlane.xlu0 %159
    %161 = vadd.xlane.f32.xlu0 %v111
    %v162 = vpop.xlane.xlu0 %161
    %163 = vadd.xlane.f32.xlu0 %v112
    %v164 = vpop.xlane.xlu0 %163
    %165 = vadd.xlane.f32.xlu0 %v113
    %v166 = vpop.xlane.xlu0 %165
    %167 = vadd.xlane.f32.xlu0 %v114
    %v168 = vpop.xlane.xlu0 %167
    %169 = vadd.xlane.f32.xlu0 %v115
    %v170 = vpop.xlane.xlu0 %169
    %171 = vadd.xlane.f32.xlu0 %v116
    %v172 = vpop.xlane.xlu0 %171
    %173 = vadd.xlane.f32.xlu0 %v117
    %v174 = vpop.xlane.xlu0 %173
    %175 = vadd.xlane.f32.xlu0 %v118
    %v176 = vpop.xlane.xlu0 %175
    %177 = vadd.xlane.f32.xlu0 %v119
    %v178 = vpop.xlane.xlu0 %177
    %179 = vadd.xlane.f32.xlu0 %v120
    %v180 = vpop.xlane.xlu0 %179
    %181 = vadd.xlane.f32.xlu0 %v121
    %v182 = vpop.xlane.xlu0 %181
    %183 = vadd.xlane.f32.xlu0 %v122
    %v184 = vpop.xlane.xlu0 %183
    %185 = vadd.xlane.f32.xlu0 %v123
    %v186 = vpop.xlane.xlu0 %185
    %187 = vadd.xlane.f32.xlu0 %v124
    %v188 = vpop.xlane.xlu0 %187
    %v189 = vmax.f32 %v126, 1e-24
    %v190 = vmax.f32 %v128, 1e-24
    %v191 = vmax.f32 %v130, 1e-24
    %v192 = vmax.f32 %v132, 1e-24
    %v193 = vmax.f32 %v134, 1e-24
    %v194 = vmax.f32 %v136, 1e-24
    %v195 = vmax.f32 %v138, 1e-24
    %v196 = vmax.f32 %v140, 1e-24
    %v197 = vmax.f32 %v142, 1e-24
    %v198 = vmax.f32 %v144, 1e-24
    %v199 = vmax.f32 %v146, 1e-24
    %v200 = vmax.f32 %v148, 1e-24
    %v201 = vmax.f32 %v150, 1e-24
    %v202 = vmax.f32 %v152, 1e-24
    %v203 = vmax.f32 %v154, 1e-24
    %v204 = vmax.f32 %v156, 1e-24
    %v205 = vmax.f32 %v158, 1e-24
    %v206 = vmax.f32 %v160, 1e-24
    %v207 = vmax.f32 %v162, 1e-24
    %v208 = vmax.f32 %v164, 1e-24
    %v209 = vmax.f32 %v166, 1e-24
    %v210 = vmax.f32 %v168, 1e-24
    %v211 = vmax.f32 %v170, 1e-24
    %v212 = vmax.f32 %v172, 1e-24
    %v213 = vmax.f32 %v174, 1e-24
    %v214 = vmax.f32 %v176, 1e-24
    %v215 = vmax.f32 %v178, 1e-24
    %v216 = vmax.f32 %v180, 1e-24
    %v217 = vmax.f32 %v182, 1e-24
    %v218 = vmax.f32 %v184, 1e-24
    %v219 = vmax.f32 %v186, 1e-24
    %v220 = vmax.f32 %v188, 1e-24
    %v221 = vrsqrt.pop %v189
    %v222 = vrsqrt.pop %v190
    %v223 = vrsqrt.pop %v191
    %v224 = vrsqrt.pop %v192
    %v225 = vrsqrt.pop %v193
    %v226 = vrsqrt.pop %v194
    %v227 = vrsqrt.pop %v195
    %v228 = vrsqrt.pop %v196
    %v229 = vrsqrt.pop %v197
    %v230 = vrsqrt.pop %v198
    %v231 = vrsqrt.pop %v199
    %v232 = vrsqrt.pop %v200
    %v233 = vrsqrt.pop %v201
    %v234 = vrsqrt.pop %v202
    %v235 = vrsqrt.pop %v203
    %v236 = vrsqrt.pop %v204
    %v237 = vrsqrt.pop %v205
    %v238 = vrsqrt.pop %v206
    %v239 = vrsqrt.pop %v207
    %v240 = vrsqrt.pop %v208
    %v241 = vrsqrt.pop %v209
    %v242 = vrsqrt.pop %v210
    %v243 = vrsqrt.pop %v211
    %v244 = vrsqrt.pop %v212
    %v245 = vrsqrt.pop %v213
    %v246 = vrsqrt.pop %v214
    %v247 = vrsqrt.pop %v215
    %v248 = vrsqrt.pop %v216
    %v249 = vrsqrt.pop %v217
    %v250 = vrsqrt.pop %v218
    %v251 = vrsqrt.pop %v219
    %v252 = vrsqrt.pop %v220
    %v253 = vstv %s92
    %v254 = vmul.f32 %v253, %v221
    %v255 = vmul.f32 %v253, %v222
    %v256 = vmul.f32 %v253, %v223
    %v257 = vmul.f32 %v253, %v224
    %v258 = vmul.f32 %v253, %v225
    %v259 = vmul.f32 %v253, %v226
    %v260 = vmul.f32 %v253, %v227
    %v261 = vmul.f32 %v253, %v228
    %v262 = vmul.f32 %v253, %v229
    %v263 = vmul.f32 %v253, %v230
    %v264 = vmul.f32 %v253, %v231
    %v265 = vmul.f32 %v253, %v232
    %v266 = vmul.f32 %v253, %v233
    %v267 = vmul.f32 %v253, %v234
    %v268 = vmul.f32 %v253, %v235
    %v269 = vmul.f32 %v253, %v236
    %v270 = vmul.f32 %v253, %v237
    %v271 = vmul.f32 %v253, %v238
    %v272 = vmul.f32 %v253, %v239
    %v273 = vmul.f32 %v253, %v240
    %v274 = vmul.f32 %v253, %v241
    %v275 = vmul.f32 %v253, %v242
    %v276 = vmul.f32 %v253, %v243
    %v277 = vmul.f32 %v253, %v244
    %v278 = vmul.f32 %v253, %v245
    %v279 = vmul.f32 %v253, %v246
    %v280 = vmul.f32 %v253, %v247
    %v281 = vmul.f32 %v253, %v248
    %v282 = vmul.f32 %v253, %v249
    %v283 = vmul.f32 %v253, %v250
    %v284 = vmul.f32 %v253, %v251
    %v285 = vmul.f32 %v253, %v252
    %v286 = vmul.f32 %v60, %v254
    %v287 = vmul.f32 %v61, %v255
    %v288 = vmul.f32 %v62, %v256
    %v289 = vmul.f32 %v63, %v257
    %v290 = vmul.f32 %v64, %v258
    %v291 = vmul.f32 %v65, %v259
    %v292 = vmul.f32 %v66, %v260
    %v293 = vmul.f32 %v67, %v261
    %v294 = vmul.f32 %v68, %v262
    %v295 = vmul.f32 %v69, %v263
    %v296 = vmul.f32 %v70, %v264
    %v297 = vmul.f32 %v71, %v265
    %v298 = vmul.f32 %v72, %v266
    %v299 = vmul.f32 %v73, %v267
    %v300 = vmul.f32 %v74, %v268
    %v301 = vmul.f32 %v75, %v269
    %v302 = vmul.f32 %v76, %v270
    %v303 = vmul.f32 %v77, %v271
    %v304 = vmul.f32 %v78, %v272
    %v305 = vmul.f32 %v79, %v273
    %v306 = vmul.f32 %v80, %v274
    %v307 = vmul.f32 %v81, %v275
    %v308 = vmul.f32 %v82, %v276
    %v309 = vmul.f32 %v83, %v277
    %v310 = vmul.f32 %v84, %v278
    %v311 = vmul.f32 %v85, %v279
    %v312 = vmul.f32 %v86, %v280
    %v313 = vmul.f32 %v87, %v281
    %v314 = vmul.f32 %v88, %v282
    %v315 = vmul.f32 %v89, %v283
    %v316 = vmul.f32 %v90, %v284
    %v317 = vmul.f32 %v91, %v285
    %v318 = vpack.c.bf16 %v61, %v60
    %v319 = vpack.c.bf16 %v63, %v62
    %v320 = vpack.c.bf16 %v65, %v64
    %v321 = vpack.c.bf16 %v67, %v66
    %v322 = vpack.c.bf16 %v69, %v68
    %v323 = vpack.c.bf16 %v71, %v70
    %v324 = vpack.c.bf16 %v73, %v72
    %v325 = vpack.c.bf16 %v75, %v74
    %v326 = vpack.c.bf16 %v77, %v76
    %v327 = vpack.c.bf16 %v79, %v78
    %v328 = vpack.c.bf16 %v81, %v80
    %v329 = vpack.c.bf16 %v83, %v82
    %v330 = vpack.c.bf16 %v85, %v84
    %v331 = vpack.c.bf16 %v87, %v86
    %v332 = vpack.c.bf16 %v89, %v88
    %v333 = vpack.c.bf16 %v91, %v90
    %v366 = vunpack.c.l.b16 %v28
    %v367 = vunpack.c.h.b16 %v28
    %v368 = vunpack.c.l.b16 %v29
    %v369 = vunpack.c.h.b16 %v29
    %v370 = vunpack.c.l.b16 %v30
    %v371 = vunpack.c.h.b16 %v30
    %v372 = vunpack.c.l.b16 %v31
    %v373 = vunpack.c.h.b16 %v31
    %v374 = vunpack.c.l.b16 %v32
    %v375 = vunpack.c.h.b16 %v32
    %v376 = vunpack.c.l.b16 %v33
    %v377 = vunpack.c.h.b16 %v33
    %v378 = vunpack.c.l.b16 %v34
    %v379 = vunpack.c.h.b16 %v34
    %v380 = vunpack.c.l.b16 %v35
    %v381 = vunpack.c.h.b16 %v35
    %v382 = vunpack.c.l.b16 %v36
    %v383 = vunpack.c.h.b16 %v36
    %v384 = vunpack.c.l.b16 %v37
    %v385 = vunpack.c.h.b16 %v37
    %v386 = vunpack.c.l.b16 %v38
    %v387 = vunpack.c.h.b16 %v38
    %v388 = vunpack.c.l.b16 %v39
    %v389 = vunpack.c.h.b16 %v39
    %v390 = vunpack.c.l.b16 %v40
    %v391 = vunpack.c.h.b16 %v40
    %v392 = vunpack.c.l.b16 %v41
    %v393 = vunpack.c.h.b16 %v41
    %v394 = vunpack.c.l.b16 %v42
    %v395 = vunpack.c.h.b16 %v42
    %v396 = vunpack.c.l.b16 %v43
    %v397 = vunpack.c.h.b16 %v43
    %v398 = vunpack.c.l.b16 %v44
    %v399 = vunpack.c.h.b16 %v44
    %v400 = vunpack.c.l.b16 %v45
    %v401 = vunpack.c.h.b16 %v45
    %v402 = vunpack.c.l.b16 %v46
    %v403 = vunpack.c.h.b16 %v46
    %v404 = vunpack.c.l.b16 %v47
    %v405 = vunpack.c.h.b16 %v47
    %v406 = vunpack.c.l.b16 %v48
    %v407 = vunpack.c.h.b16 %v48
    %v408 = vunpack.c.l.b16 %v49
    %v409 = vunpack.c.h.b16 %v49
    %v410 = vunpack.c.l.b16 %v50
    %v411 = vunpack.c.h.b16 %v50
    %v412 = vunpack.c.l.b16 %v51
    %v413 = vunpack.c.h.b16 %v51
    %v414 = vunpack.c.l.b16 %v52
    %v415 = vunpack.c.h.b16 %v52
    %v416 = vunpack.c.l.b16 %v53
    %v417 = vunpack.c.h.b16 %v53
    %v418 = vunpack.c.l.b16 %v54
    %v419 = vunpack.c.h.b16 %v54
    %v420 = vunpack.c.l.b16 %v55
    %v421 = vunpack.c.h.b16 %v55
    %v422 = vunpack.c.l.b16 %v56
    %v423 = vunpack.c.h.b16 %v56
    %v424 = vunpack.c.l.b16 %v57
    %v425 = vunpack.c.h.b16 %v57
    %v426 = vunpack.c.l.b16 %v58
    %v427 = vunpack.c.h.b16 %v58
    %v428 = vunpack.c.l.b16 %v59
    %v429 = vunpack.c.h.b16 %v59
    %v430 = vpack.c.b16 %v368, %v366
    %v431 = vpack.c.b16 %v369, %v367
    %v432 = vpack.c.b16 %v372, %v370
    %v433 = vpack.c.b16 %v373, %v371
    %v434 = vpack.c.b16 %v376, %v374
    %v435 = vpack.c.b16 %v377, %v375
    %v436 = vpack.c.b16 %v380, %v378
    %v437 = vpack.c.b16 %v381, %v379
    %v438 = vpack.c.b16 %v384, %v382
    %v439 = vpack.c.b16 %v385, %v383
    %v440 = vpack.c.b16 %v388, %v386
    %v441 = vpack.c.b16 %v389, %v387
    %v442 = vpack.c.b16 %v392, %v390
    %v443 = vpack.c.b16 %v393, %v391
    %v444 = vpack.c.b16 %v396, %v394
    %v445 = vpack.c.b16 %v397, %v395
    %v446 = vpack.c.b16 %v400, %v398
    %v447 = vpack.c.b16 %v401, %v399
    %v448 = vpack.c.b16 %v404, %v402
    %v449 = vpack.c.b16 %v405, %v403
    %v450 = vpack.c.b16 %v408, %v406
    %v451 = vpack.c.b16 %v409, %v407
    %v452 = vpack.c.b16 %v412, %v410
    %v453 = vpack.c.b16 %v413, %v411
    %v454 = vpack.c.b16 %v416, %v414
    %v455 = vpack.c.b16 %v417, %v415
    %v456 = vpack.c.b16 %v420, %v418
    %v457 = vpack.c.b16 %v421, %v419
    %v458 = vpack.c.b16 %v424, %v422
    %v459 = vpack.c.b16 %v425, %v423
    %v460 = vpack.c.b16 %v428, %v426
    %v461 = vpack.c.b16 %v429, %v427
    %494 = vmatprep.subr.bf16.mxu0 0
    %495 = vmatpush1.bf16.msra.mxu0 %v318
    %496 = vmatprep.subr.bf16.mxu0 0
    %497 = vmatpush1.bf16.msra.mxu0 %v319
    %498 = vmatprep.subr.bf16.mxu0 0
    %499 = vmatpush1.bf16.msra.mxu0 %v320
    %500 = vmatprep.subr.bf16.mxu0 0
    %501 = vmatpush1.bf16.msra.mxu0 %v321
    %502 = vmatprep.subr.bf16.mxu0 0
    %503 = vmatpush1.bf16.msra.mxu0 %v322
    %504 = vmatprep.subr.bf16.mxu0 0
    %505 = vmatpush1.bf16.msra.mxu0 %v323
    %506 = vmatprep.subr.bf16.mxu0 0
    %507 = vmatpush1.bf16.msra.mxu0 %v324
    %508 = vmatprep.subr.bf16.mxu0 0
    %509 = vmatpush1.bf16.msra.mxu0 %v325
    %510 = vmatprep.subr.bf16.mxu0 0
    %511 = vmatpush1.bf16.msra.mxu0 %v326
    %512 = vmatprep.subr.bf16.mxu0 0
    %513 = vmatpush1.bf16.msra.mxu0 %v327
    %514 = vmatprep.subr.bf16.mxu0 0
    %515 = vmatpush1.bf16.msra.mxu0 %v328
    %516 = vmatprep.subr.bf16.mxu0 0
    %517 = vmatpush1.bf16.msra.mxu0 %v329
    %518 = vmatprep.subr.bf16.mxu0 0
    %519 = vmatpush1.bf16.msra.mxu0 %v330
    %520 = vmatprep.subr.bf16.mxu0 0
    %521 = vmatpush1.bf16.msra.mxu0 %v331
    %522 = vmatprep.subr.bf16.mxu0 0
    %523 = vmatpush1.bf16.msra.mxu0 %v332
    %524 = vmatprep.subr.bf16.mxu0 0
    %525 = vmatpush1.bf16.msra.mxu0 %v333
    %526 = vmatprep.mubr.bf16.mxu0 %v431
    %527 = vmatmul.mubr.bf16.gmra.mrb[0].mxu0 %v430
    %v528 = vpop.f32.mrb[0].mxu0
    %v529 = vadd.f32 0.0, %v528
    %v530 = vpop.f32.mrb[0].mxu0
    %v531 = vpop.f32.mrb[0].mxu0
    %v532 = vadd.f32 0.0, %v531
    %v533 = vpop.f32.mrb[0].mxu0
    %534 = vmatprep.mubr.bf16.mxu0 %v433
    %535 = vmatmul.mubr.bf16.gmra.mrb[0].mxu0 %v432
    %v536 = vpop.f32.mrb[0].mxu0
    %v537 = vadd.f32 0.0, %v536
    %v538 = vpop.f32.mrb[0].mxu0
    %v539 = vpop.f32.mrb[0].mxu0
    %v540 = vadd.f32 0.0, %v539
    %v541 = vpop.f32.mrb[0].mxu0
    %542 = vmatprep.mubr.bf16.mxu0 %v435
    %543 = vmatmul.mubr.bf16.gmra.mrb[0].mxu0 %v434
    %v544 = vpop.f32.mrb[0].mxu0
    %v545 = vadd.f32 0.0, %v544
    %v546 = vpop.f32.mrb[0].mxu0
    %v547 = vpop.f32.mrb[0].mxu0
    %v548 = vadd.f32 0.0, %v547
    %v549 = vpop.f32.mrb[0].mxu0
    %550 = vmatprep.mubr.bf16.mxu0 %v437
    %551 = vmatmul.mubr.bf16.gmra.mrb[0].mxu0 %v436
    %v552 = vpop.f32.mrb[0].mxu0
    %v553 = vadd.f32 0.0, %v552
    %v554 = vpop.f32.mrb[0].mxu0
    %v555 = vpop.f32.mrb[0].mxu0
    %v556 = vadd.f32 0.0, %v555
    %v557 = vpop.f32.mrb[0].mxu0
    %558 = vmatprep.mubr.bf16.mxu0 %v439
    %559 = vmatmul.mubr.bf16.gmra.mrb[0].mxu0 %v438
    %v560 = vpop.f32.mrb[0].mxu0
    %v561 = vadd.f32 0.0, %v560
    %v562 = vpop.f32.mrb[0].mxu0
    %v563 = vpop.f32.mrb[0].mxu0
    %v564 = vadd.f32 0.0, %v563
    %v565 = vpop.f32.mrb[0].mxu0
    %566 = vmatprep.mubr.bf16.mxu0 %v441
    %567 = vmatmul.mubr.bf16.gmra.mrb[0].mxu0 %v440
    %v568 = vpop.f32.mrb[0].mxu0
    %v569 = vadd.f32 0.0, %v568
    %v570 = vpop.f32.mrb[0].mxu0
    %v571 = vpop.f32.mrb[0].mxu0
    %v572 = vadd.f32 0.0, %v571
    %v573 = vpop.f32.mrb[0].mxu0
    %574 = vmatprep.mubr.bf16.mxu0 %v443
    %575 = vmatmul.mubr.bf16.gmra.mrb[0].mxu0 %v442
    %v576 = vpop.f32.mrb[0].mxu0
    %v577 = vadd.f32 0.0, %v576
    %v578 = vpop.f32.mrb[0].mxu0
    %v579 = vpop.f32.mrb[0].mxu0
    %v580 = vadd.f32 0.0, %v579
    %v581 = vpop.f32.mrb[0].mxu0
    %582 = vmatprep.mubr.bf16.mxu0 %v445
    %583 = vmatmul.mubr.bf16.gmra.mrb[0].mxu0 %v444
    %v584 = vpop.f32.mrb[0].mxu0
    %v585 = vadd.f32 0.0, %v584
    %v586 = vpop.f32.mrb[0].mxu0
    %v587 = vpop.f32.mrb[0].mxu0
    %v588 = vadd.f32 0.0, %v587
    %v589 = vpop.f32.mrb[0].mxu0
    %590 = vmatprep.mubr.bf16.mxu0 %v447
    %591 = vmatmul.mubr.bf16.gmra.mrb[0].mxu0 %v446
    %v592 = vpop.f32.mrb[0].mxu0
    %v593 = vadd.f32 0.0, %v592
    %v594 = vpop.f32.mrb[0].mxu0
    %v595 = vpop.f32.mrb[0].mxu0
    %v596 = vadd.f32 0.0, %v595
    %v597 = vpop.f32.mrb[0].mxu0
    %598 = vmatprep.mubr.bf16.mxu0 %v449
    %599 = vmatmul.mubr.bf16.gmra.mrb[0].mxu0 %v448
    %v600 = vpop.f32.mrb[0].mxu0
    %v601 = vadd.f32 0.0, %v600
    %v602 = vpop.f32.mrb[0].mxu0
    %v603 = vpop.f32.mrb[0].mxu0
    %v604 = vadd.f32 0.0, %v603
    %v605 = vpop.f32.mrb[0].mxu0
    %606 = vmatprep.mubr.bf16.mxu0 %v451
    %607 = vmatmul.mubr.bf16.gmra.mrb[0].mxu0 %v450
    %v608 = vpop.f32.mrb[0].mxu0
    %v609 = vadd.f32 0.0, %v608
    %v610 = vpop.f32.mrb[0].mxu0
    %v611 = vpop.f32.mrb[0].mxu0
    %v612 = vadd.f32 0.0, %v611
    %v613 = vpop.f32.mrb[0].mxu0
    %614 = vmatprep.mubr.bf16.mxu0 %v453
    %615 = vmatmul.mubr.bf16.gmra.mrb[0].mxu0 %v452
    %v616 = vpop.f32.mrb[0].mxu0
    %v617 = vadd.f32 0.0, %v616
    %v618 = vpop.f32.mrb[0].mxu0
    %v619 = vpop.f32.mrb[0].mxu0
    %v620 = vadd.f32 0.0, %v619
    %v621 = vpop.f32.mrb[0].mxu0
    %622 = vmatprep.mubr.bf16.mxu0 %v455
    %623 = vmatmul.mubr.bf16.gmra.mrb[0].mxu0 %v454
    %v624 = vpop.f32.mrb[0].mxu0
    %v625 = vadd.f32 0.0, %v624
    %v626 = vpop.f32.mrb[0].mxu0
    %v627 = vpop.f32.mrb[0].mxu0
    %v628 = vadd.f32 0.0, %v627
    %v629 = vpop.f32.mrb[0].mxu0
    %630 = vmatprep.mubr.bf16.mxu0 %v457
    %631 = vmatmul.mubr.bf16.gmra.mrb[0].mxu0 %v456
    %v632 = vpop.f32.mrb[0].mxu0
    %v633 = vadd.f32 0.0, %v632
    %v634 = vpop.f32.mrb[0].mxu0
    %v635 = vpop.f32.mrb[0].mxu0
    %v636 = vadd.f32 0.0, %v635
    %v637 = vpop.f32.mrb[0].mxu0
    %638 = vmatprep.mubr.bf16.mxu0 %v459
    %639 = vmatmul.mubr.bf16.gmra.mrb[0].mxu0 %v458
    %v640 = vpop.f32.mrb[0].mxu0
    %v641 = vadd.f32 0.0, %v640
    %v642 = vpop.f32.mrb[0].mxu0
    %v643 = vpop.f32.mrb[0].mxu0
    %v644 = vadd.f32 0.0, %v643
    %v645 = vpop.f32.mrb[0].mxu0
    %646 = vmatprep.mubr.bf16.mxu0 %v461
    %647 = vmatmul.mubr.bf16.gmra.mrb[0].mxu0 %v460
    %v648 = vpop.f32.mrb[0].mxu0
    %v649 = vadd.f32 0.0, %v648
    %v650 = vpop.f32.mrb[0].mxu0
    %v651 = vpop.f32.mrb[0].mxu0
    %v652 = vadd.f32 0.0, %v651
    %v653 = vpop.f32.mrb[0].mxu0
    %654 = vdwg.mxu0
    %s655 = sld [smem:[#allocation2 + $0x1]]
    %v656 = vmul.f32 %v529, %v529
    %v657 = vmul.f32 %v532, %v532
    %v658 = vmul.f32 %v537, %v537
    %v659 = vmul.f32 %v540, %v540
    %v660 = vmul.f32 %v545, %v545
    %v661 = vmul.f32 %v548, %v548
    %v662 = vmul.f32 %v553, %v553
    %v663 = vmul.f32 %v556, %v556
    %v664 = vmul.f32 %v561, %v561
    %v665 = vmul.f32 %v564, %v564
    %v666 = vmul.f32 %v569, %v569
    %v667 = vmul.f32 %v572, %v572
    %v668 = vmul.f32 %v577, %v577
    %v669 = vmul.f32 %v580, %v580
    %v670 = vmul.f32 %v585, %v585
    %v671 = vmul.f32 %v588, %v588
    %v672 = vmul.f32 %v593, %v593
    %v673 = vmul.f32 %v596, %v596
    %v674 = vmul.f32 %v601, %v601
    %v675 = vmul.f32 %v604, %v604
    %v676 = vmul.f32 %v609, %v609
    %v677 = vmul.f32 %v612, %v612
    %v678 = vmul.f32 %v617, %v617
    %v679 = vmul.f32 %v620, %v620
    %v680 = vmul.f32 %v625, %v625
    %v681 = vmul.f32 %v628, %v628
    %v682 = vmul.f32 %v633, %v633
    %v683 = vmul.f32 %v636, %v636
    %v684 = vmul.f32 %v641, %v641
    %v685 = vmul.f32 %v644, %v644
    %v686 = vmul.f32 %v649, %v649
    %v687 = vmul.f32 %v652, %v652
    %688 = vadd.xlane.f32.xlu0 %v656
    %v689 = vpop.xlane.xlu0 %688
    %690 = vadd.xlane.f32.xlu0 %v657
    %v691 = vpop.xlane.xlu0 %690
    %692 = vadd.xlane.f32.xlu0 %v658
    %v693 = vpop.xlane.xlu0 %692
    %694 = vadd.xlane.f32.xlu0 %v659
    %v695 = vpop.xlane.xlu0 %694
    %696 = vadd.xlane.f32.xlu0 %v660
    %v697 = vpop.xlane.xlu0 %696
    %698 = vadd.xlane.f32.xlu0 %v661
    %v699 = vpop.xlane.xlu0 %698
    %700 = vadd.xlane.f32.xlu0 %v662
    %v701 = vpop.xlane.xlu0 %700
    %702 = vadd.xlane.f32.xlu0 %v663
    %v703 = vpop.xlane.xlu0 %702
    %704 = vadd.xlane.f32.xlu0 %v664
    %v705 = vpop.xlane.xlu0 %704
    %706 = vadd.xlane.f32.xlu0 %v665
    %v707 = vpop.xlane.xlu0 %706
    %708 = vadd.xlane.f32.xlu0 %v666
    %v709 = vpop.xlane.xlu0 %708
    %710 = vadd.xlane.f32.xlu0 %v667
    %v711 = vpop.xlane.xlu0 %710
    %712 = vadd.xlane.f32.xlu0 %v668
    %v713 = vpop.xlane.xlu0 %712
    %714 = vadd.xlane.f32.xlu0 %v669
    %v715 = vpop.xlane.xlu0 %714
    %716 = vadd.xlane.f32.xlu0 %v670
    %v717 = vpop.xlane.xlu0 %716
    %718 = vadd.xlane.f32.xlu0 %v671
    %v719 = vpop.xlane.xlu0 %718
    %720 = vadd.xlane.f32.xlu0 %v672
    %v721 = vpop.xlane.xlu0 %720
    %722 = vadd.xlane.f32.xlu0 %v673
    %v723 = vpop.xlane.xlu0 %722
    %724 = vadd.xlane.f32.xlu0 %v674
    %v725 = vpop.xlane.xlu0 %724
    %726 = vadd.xlane.f32.xlu0 %v675
    %v727 = vpop.xlane.xlu0 %726
    %728 = vadd.xlane.f32.xlu0 %v676
    %v729 = vpop.xlane.xlu0 %728
    %730 = vadd.xlane.f32.xlu0 %v677
    %v731 = vpop.xlane.xlu0 %730
    %732 = vadd.xlane.f32.xlu0 %v678
    %v733 = vpop.xlane.xlu0 %732
    %734 = vadd.xlane.f32.xlu0 %v679
    %v735 = vpop.xlane.xlu0 %734
    %736 = vadd.xlane.f32.xlu0 %v680
    %v737 = vpop.xlane.xlu0 %736
    %738 = vadd.xlane.f32.xlu0 %v681
    %v739 = vpop.xlane.xlu0 %738
    %740 = vadd.xlane.f32.xlu0 %v682
    %v741 = vpop.xlane.xlu0 %740
    %742 = vadd.xlane.f32.xlu0 %v683
    %v743 = vpop.xlane.xlu0 %742
    %744 = vadd.xlane.f32.xlu0 %v684
    %v745 = vpop.xlane.xlu0 %744
    %746 = vadd.xlane.f32.xlu0 %v685
    %v747 = vpop.xlane.xlu0 %746
    %748 = vadd.xlane.f32.xlu0 %v686
    %v749 = vpop.xlane.xlu0 %748
    %750 = vadd.xlane.f32.xlu0 %v687
    %v751 = vpop.xlane.xlu0 %750
    %v752 = vmax.f32 %v689, 1e-24
    %v753 = vmax.f32 %v691, 1e-24
    %v754 = vmax.f32 %v693, 1e-24
    %v755 = vmax.f32 %v695, 1e-24
    %v756 = vmax.f32 %v697, 1e-24
    %v757 = vmax.f32 %v699, 1e-24
    %v758 = vmax.f32 %v701, 1e-24
    %v759 = vmax.f32 %v703, 1e-24
    %v760 = vmax.f32 %v705, 1e-24
    %v761 = vmax.f32 %v707, 1e-24
    %v762 = vmax.f32 %v709, 1e-24
    %v763 = vmax.f32 %v711, 1e-24
    %v764 = vmax.f32 %v713, 1e-24
    %v765 = vmax.f32 %v715, 1e-24
    %v766 = vmax.f32 %v717, 1e-24
    %v767 = vmax.f32 %v719, 1e-24
    %v768 = vmax.f32 %v721, 1e-24
    %v769 = vmax.f32 %v723, 1e-24
    %v770 = vmax.f32 %v725, 1e-24
    %v771 = vmax.f32 %v727, 1e-24
    %v772 = vmax.f32 %v729, 1e-24
    %v773 = vmax.f32 %v731, 1e-24
    %v774 = vmax.f32 %v733, 1e-24
    %v775 = vmax.f32 %v735, 1e-24
    %v776 = vmax.f32 %v737, 1e-24
    %v777 = vmax.f32 %v739, 1e-24
    %v778 = vmax.f32 %v741, 1e-24
    %v779 = vmax.f32 %v743, 1e-24
    %v780 = vmax.f32 %v745, 1e-24
    %v781 = vmax.f32 %v747, 1e-24
    %v782 = vmax.f32 %v749, 1e-24
    %v783 = vmax.f32 %v751, 1e-24
    %v784 = vrsqrt.pop %v752
    %v785 = vrsqrt.pop %v753
    %v786 = vrsqrt.pop %v754
    %v787 = vrsqrt.pop %v755
    %v788 = vrsqrt.pop %v756
    %v789 = vrsqrt.pop %v757
    %v790 = vrsqrt.pop %v758
    %v791 = vrsqrt.pop %v759
    %v792 = vrsqrt.pop %v760
    %v793 = vrsqrt.pop %v761
    %v794 = vrsqrt.pop %v762
    %v795 = vrsqrt.pop %v763
    %v796 = vrsqrt.pop %v764
    %v797 = vrsqrt.pop %v765
    %v798 = vrsqrt.pop %v766
    %v799 = vrsqrt.pop %v767
    %v800 = vrsqrt.pop %v768
    %v801 = vrsqrt.pop %v769
    %v802 = vrsqrt.pop %v770
    %v803 = vrsqrt.pop %v771
    %v804 = vrsqrt.pop %v772
    %v805 = vrsqrt.pop %v773
    %v806 = vrsqrt.pop %v774
    %v807 = vrsqrt.pop %v775
    %v808 = vrsqrt.pop %v776
    %v809 = vrsqrt.pop %v777
    %v810 = vrsqrt.pop %v778
    %v811 = vrsqrt.pop %v779
    %v812 = vrsqrt.pop %v780
    %v813 = vrsqrt.pop %v781
    %v814 = vrsqrt.pop %v782
    %v815 = vrsqrt.pop %v783
    %v816 = vstv %s655
    %v817 = vmul.f32 %v816, %v784
    %v818 = vmul.f32 %v816, %v785
    %v819 = vmul.f32 %v816, %v786
    %v820 = vmul.f32 %v816, %v787
    %v821 = vmul.f32 %v816, %v788
    %v822 = vmul.f32 %v816, %v789
    %v823 = vmul.f32 %v816, %v790
    %v824 = vmul.f32 %v816, %v791
    %v825 = vmul.f32 %v816, %v792
    %v826 = vmul.f32 %v816, %v793
    %v827 = vmul.f32 %v816, %v794
    %v828 = vmul.f32 %v816, %v795
    %v829 = vmul.f32 %v816, %v796
    %v830 = vmul.f32 %v816, %v797
    %v831 = vmul.f32 %v816, %v798
    %v832 = vmul.f32 %v816, %v799
    %v833 = vmul.f32 %v816, %v800
    %v834 = vmul.f32 %v816, %v801
    %v835 = vmul.f32 %v816, %v802
    %v836 = vmul.f32 %v816, %v803
    %v837 = vmul.f32 %v816, %v804
    %v838 = vmul.f32 %v816, %v805
    %v839 = vmul.f32 %v816, %v806
    %v840 = vmul.f32 %v816, %v807
    %v841 = vmul.f32 %v816, %v808
    %v842 = vmul.f32 %v816, %v809
    %v843 = vmul.f32 %v816, %v810
    %v844 = vmul.f32 %v816, %v811
    %v845 = vmul.f32 %v816, %v812
    %v846 = vmul.f32 %v816, %v813
    %v847 = vmul.f32 %v816, %v814
    %v848 = vmul.f32 %v816, %v815
    %v849 = vmul.f32 %v529, %v817
    %v850 = vmul.f32 %v532, %v818
    %v851 = vmul.f32 %v537, %v819
    %v852 = vmul.f32 %v540, %v820
    %v853 = vmul.f32 %v545, %v821
    %v854 = vmul.f32 %v548, %v822
    %v855 = vmul.f32 %v553, %v823
    %v856 = vmul.f32 %v556, %v824
    %v857 = vmul.f32 %v561, %v825
    %v858 = vmul.f32 %v564, %v826
    %v859 = vmul.f32 %v569, %v827
    %v860 = vmul.f32 %v572, %v828
    %v861 = vmul.f32 %v577, %v829
    %v862 = vmul.f32 %v580, %v830
    %v863 = vmul.f32 %v585, %v831
    %v864 = vmul.f32 %v588, %v832
    %v865 = vmul.f32 %v593, %v833
    %v866 = vmul.f32 %v596, %v834
    %v867 = vmul.f32 %v601, %v835
    %v868 = vmul.f32 %v604, %v836
    %v869 = vmul.f32 %v609, %v837
    %v870 = vmul.f32 %v612, %v838
    %v871 = vmul.f32 %v617, %v839
    %v872 = vmul.f32 %v620, %v840
    %v873 = vmul.f32 %v625, %v841
    %v874 = vmul.f32 %v628, %v842
    %v875 = vmul.f32 %v633, %v843
    %v876 = vmul.f32 %v636, %v844
    %v877 = vmul.f32 %v641, %v845
    %v878 = vmul.f32 %v644, %v846
    %v879 = vmul.f32 %v649, %v847
    %v880 = vmul.f32 %v652, %v848
    %v881 = vadd.f32 %v286, %v849
    %v882 = vadd.f32 %v287, %v850
    %v883 = vadd.f32 %v288, %v851
    %v884 = vadd.f32 %v289, %v852
    %v885 = vadd.f32 %v290, %v853
    %v886 = vadd.f32 %v291, %v854
    %v887 = vadd.f32 %v292, %v855
    %v888 = vadd.f32 %v293, %v856
    %v889 = vadd.f32 %v294, %v857
    %v890 = vadd.f32 %v295, %v858
    %v891 = vadd.f32 %v296, %v859
    %v892 = vadd.f32 %v297, %v860
    %v893 = vadd.f32 %v298, %v861
    %v894 = vadd.f32 %v299, %v862
    %v895 = vadd.f32 %v300, %v863
    %v896 = vadd.f32 %v301, %v864
    %v897 = vadd.f32 %v302, %v865
    %v898 = vadd.f32 %v303, %v866
    %v899 = vadd.f32 %v304, %v867
    %v900 = vadd.f32 %v305, %v868
    %v901 = vadd.f32 %v306, %v869
    %v902 = vadd.f32 %v307, %v870
    %v903 = vadd.f32 %v308, %v871
    %v904 = vadd.f32 %v309, %v872
    %v905 = vadd.f32 %v310, %v873
    %v906 = vadd.f32 %v311, %v874
    %v907 = vadd.f32 %v312, %v875
    %v908 = vadd.f32 %v313, %v876
    %v909 = vadd.f32 %v314, %v877
    %v910 = vadd.f32 %v315, %v878
    %v911 = vadd.f32 %v316, %v879
    %v912 = vadd.f32 %v317, %v880
    %v913 = vpack.c.bf16 %v532, %v529
    %v914 = vpack.c.bf16 %v540, %v537
    %v915 = vpack.c.bf16 %v548, %v545
    %v916 = vpack.c.bf16 %v556, %v553
    %v917 = vpack.c.bf16 %v564, %v561
    %v918 = vpack.c.bf16 %v572, %v569
    %v919 = vpack.c.bf16 %v580, %v577
    %v920 = vpack.c.bf16 %v588, %v585
    %v921 = vpack.c.bf16 %v596, %v593
    %v922 = vpack.c.bf16 %v604, %v601
    %v923 = vpack.c.bf16 %v612, %v609
    %v924 = vpack.c.bf16 %v620, %v617
    %v925 = vpack.c.bf16 %v628, %v625
    %v926 = vpack.c.bf16 %v636, %v633
    %v927 = vpack.c.bf16 %v644, %v641
    %v928 = vpack.c.bf16 %v652, %v649
    %929 = vmatprep.subr.bf16.mxu0 0
    %930 = vmatpush1.bf16.msra.mxu0 %v913
    %931 = vmatprep.subr.bf16.mxu0 0
    %932 = vmatpush1.bf16.msra.mxu0 %v914
    %933 = vmatprep.subr.bf16.mxu0 0
    %934 = vmatpush1.bf16.msra.mxu0 %v915
    %935 = vmatprep.subr.bf16.mxu0 0
    %936 = vmatpush1.bf16.msra.mxu0 %v916
    %937 = vmatprep.subr.bf16.mxu0 0
    %938 = vmatpush1.bf16.msra.mxu0 %v917
    %939 = vmatprep.subr.bf16.mxu0 0
    %940 = vmatpush1.bf16.msra.mxu0 %v918
    %941 = vmatprep.subr.bf16.mxu0 0
    %942 = vmatpush1.bf16.msra.mxu0 %v919
    %943 = vmatprep.subr.bf16.mxu0 0
    %944 = vmatpush1.bf16.msra.mxu0 %v920
    %945 = vmatprep.subr.bf16.mxu0 0
    %946 = vmatpush1.bf16.msra.mxu0 %v921
    %947 = vmatprep.subr.bf16.mxu0 0
    %948 = vmatpush1.bf16.msra.mxu0 %v922
    %949 = vmatprep.subr.bf16.mxu0 0
    %950 = vmatpush1.bf16.msra.mxu0 %v923
    %951 = vmatprep.subr.bf16.mxu0 0
    %952 = vmatpush1.bf16.msra.mxu0 %v924
    %953 = vmatprep.subr.bf16.mxu0 0
    %954 = vmatpush1.bf16.msra.mxu0 %v925
    %955 = vmatprep.subr.bf16.mxu0 0
    %956 = vmatpush1.bf16.msra.mxu0 %v926
    %957 = vmatprep.subr.bf16.mxu0 0
    %958 = vmatpush1.bf16.msra.mxu0 %v927
    %959 = vmatprep.subr.bf16.mxu0 0
    %960 = vmatpush1.bf16.msra.mxu0 %v928
    %961 = vmatprep.mubr.bf16.mxu0 %v431
    %962 = vmatmul.mubr.bf16.gmra.mrb[0].mxu0 %v430
    %v963 = vpop.f32.mrb[0].mxu0
    %v964 = vadd.f32 0.0, %v963
    %v965 = vpop.f32.mrb[0].mxu0
    %v966 = vpop.f32.mrb[0].mxu0
    %v967 = vadd.f32 0.0, %v966
    %v968 = vpop.f32.mrb[0].mxu0
    %969 = vmatprep.mubr.bf16.mxu0 %v433
    %970 = vmatmul.mubr.bf16.gmra.mrb[0].mxu0 %v432
    %v971 = vpop.f32.mrb[0].mxu0
    %v972 = vadd.f32 0.0, %v971
    %v973 = vpop.f32.mrb[0].mxu0
    %v974 = vpop.f32.mrb[0].mxu0
    %v975 = vadd.f32 0.0, %v974
    %v976 = vpop.f32.mrb[0].mxu0
    %977 = vmatprep.mubr.bf16.mxu0 %v435
    %978 = vmatmul.mubr.bf16.gmra.mrb[0].mxu0 %v434
    %v979 = vpop.f32.mrb[0].mxu0
    %v980 = vadd.f32 0.0, %v979
    %v981 = vpop.f32.mrb[0].mxu0
    %v982 = vpop.f32.mrb[0].mxu0
    %v983 = vadd.f32 0.0, %v982
    %v984 = vpop.f32.mrb[0].mxu0
    %985 = vmatprep.mubr.bf16.mxu0 %v437
    %986 = vmatmul.mubr.bf16.gmra.mrb[0].mxu0 %v436
    %v987 = vpop.f32.mrb[0].mxu0
    %v988 = vadd.f32 0.0, %v987
    %v989 = vpop.f32.mrb[0].mxu0
    %v990 = vpop.f32.mrb[0].mxu0
    %v991 = vadd.f32 0.0, %v990
    %v992 = vpop.f32.mrb[0].mxu0
    %993 = vmatprep.mubr.bf16.mxu0 %v439
    %994 = vmatmul.mubr.bf16.gmra.mrb[0].mxu0 %v438
    %v995 = vpop.f32.mrb[0].mxu0
    %v996 = vadd.f32 0.0, %v995
    %v997 = vpop.f32.mrb[0].mxu0
    %v998 = vpop.f32.mrb[0].mxu0
    %v999 = vadd.f32 0.0, %v998
    %v1000 = vpop.f32.mrb[0].mxu0
    %1001 = vmatprep.mubr.bf16.mxu0 %v441
    %1002 = vmatmul.mubr.bf16.gmra.mrb[0].mxu0 %v440
    %v1003 = vpop.f32.mrb[0].mxu0
    %v1004 = vadd.f32 0.0, %v1003
    %v1005 = vpop.f32.mrb[0].mxu0
    %v1006 = vpop.f32.mrb[0].mxu0
    %v1007 = vadd.f32 0.0, %v1006
    %v1008 = vpop.f32.mrb[0].mxu0
    %1009 = vmatprep.mubr.bf16.mxu0 %v443
    %1010 = vmatmul.mubr.bf16.gmra.mrb[0].mxu0 %v442
    %v1011 = vpop.f32.mrb[0].mxu0
    %v1012 = vadd.f32 0.0, %v1011
    %v1013 = vpop.f32.mrb[0].mxu0
    %v1014 = vpop.f32.mrb[0].mxu0
    %v1015 = vadd.f32 0.0, %v1014
    %v1016 = vpop.f32.mrb[0].mxu0
    %1017 = vmatprep.mubr.bf16.mxu0 %v445
    %1018 = vmatmul.mubr.bf16.gmra.mrb[0].mxu0 %v444
    %v1019 = vpop.f32.mrb[0].mxu0
    %v1020 = vadd.f32 0.0, %v1019
    %v1021 = vpop.f32.mrb[0].mxu0
    %v1022 = vpop.f32.mrb[0].mxu0
    %v1023 = vadd.f32 0.0, %v1022
    %v1024 = vpop.f32.mrb[0].mxu0
    %1025 = vmatprep.mubr.bf16.mxu0 %v447
    %1026 = vmatmul.mubr.bf16.gmra.mrb[0].mxu0 %v446
    %v1027 = vpop.f32.mrb[0].mxu0
    %v1028 = vadd.f32 0.0, %v1027
    %v1029 = vpop.f32.mrb[0].mxu0
    %v1030 = vpop.f32.mrb[0].mxu0
    %v1031 = vadd.f32 0.0, %v1030
    %v1032 = vpop.f32.mrb[0].mxu0
    %1033 = vmatprep.mubr.bf16.mxu0 %v449
    %1034 = vmatmul.mubr.bf16.gmra.mrb[0].mxu0 %v448
    %v1035 = vpop.f32.mrb[0].mxu0
    %v1036 = vadd.f32 0.0, %v1035
    %v1037 = vpop.f32.mrb[0].mxu0
    %v1038 = vpop.f32.mrb[0].mxu0
    %v1039 = vadd.f32 0.0, %v1038
    %v1040 = vpop.f32.mrb[0].mxu0
    %1041 = vmatprep.mubr.bf16.mxu0 %v451
    %1042 = vmatmul.mubr.bf16.gmra.mrb[0].mxu0 %v450
    %v1043 = vpop.f32.mrb[0].mxu0
    %v1044 = vadd.f32 0.0, %v1043
    %v1045 = vpop.f32.mrb[0].mxu0
    %v1046 = vpop.f32.mrb[0].mxu0
    %v1047 = vadd.f32 0.0, %v1046
    %v1048 = vpop.f32.mrb[0].mxu0
    %1049 = vmatprep.mubr.bf16.mxu0 %v453
    %1050 = vmatmul.mubr.bf16.gmra.mrb[0].mxu0 %v452
    %v1051 = vpop.f32.mrb[0].mxu0
    %v1052 = vadd.f32 0.0, %v1051
    %v1053 = vpop.f32.mrb[0].mxu0
    %v1054 = vpop.f32.mrb[0].mxu0
    %v1055 = vadd.f32 0.0, %v1054
    %v1056 = vpop.f32.mrb[0].mxu0
    %1057 = vmatprep.mubr.bf16.mxu0 %v455
    %1058 = vmatmul.mubr.bf16.gmra.mrb[0].mxu0 %v454
    %v1059 = vpop.f32.mrb[0].mxu0
    %v1060 = vadd.f32 0.0, %v1059
    %v1061 = vpop.f32.mrb[0].mxu0
    %v1062 = vpop.f32.mrb[0].mxu0
    %v1063 = vadd.f32 0.0, %v1062
    %v1064 = vpop.f32.mrb[0].mxu0
    %1065 = vmatprep.mubr.bf16.mxu0 %v457
    %1066 = vmatmul.mubr.bf16.gmra.mrb[0].mxu0 %v456
    %v1067 = vpop.f32.mrb[0].mxu0
    %v1068 = vadd.f32 0.0, %v1067
    %v1069 = vpop.f32.mrb[0].mxu0
    %v1070 = vpop.f32.mrb[0].mxu0
    %v1071 = vadd.f32 0.0, %v1070
    %v1072 = vpop.f32.mrb[0].mxu0
    %1073 = vmatprep.mubr.bf16.mxu0 %v459
    %1074 = vmatmul.mubr.bf16.gmra.mrb[0].mxu0 %v458
    %v1075 = vpop.f32.mrb[0].mxu0
    %v1076 = vadd.f32 0.0, %v1075
    %v1077 = vpop.f32.mrb[0].mxu0
    %v1078 = vpop.f32.mrb[0].mxu0
    %v1079 = vadd.f32 0.0, %v1078
    %v1080 = vpop.f32.mrb[0].mxu0
    %1081 = vmatprep.mubr.bf16.mxu0 %v461
    %1082 = vmatmul.mubr.bf16.gmra.mrb[0].mxu0 %v460
    %v1083 = vpop.f32.mrb[0].mxu0
    %v1084 = vadd.f32 0.0, %v1083
    %v1085 = vpop.f32.mrb[0].mxu0
    %v1086 = vpop.f32.mrb[0].mxu0
    %v1087 = vadd.f32 0.0, %v1086
    %v1088 = vpop.f32.mrb[0].mxu0
    %1089 = vdwg.mxu0
    %s1090 = sld [smem:[#allocation2 + $0x2]]
    %v1091 = vmul.f32 %v964, %v964
    %v1092 = vmul.f32 %v967, %v967
    %v1093 = vmul.f32 %v972, %v972
    %v1094 = vmul.f32 %v975, %v975
    %v1095 = vmul.f32 %v980, %v980
    %v1096 = vmul.f32 %v983, %v983
    %v1097 = vmul.f32 %v988, %v988
    %v1098 = vmul.f32 %v991, %v991
    %v1099 = vmul.f32 %v996, %v996
    %v1100 = vmul.f32 %v999, %v999
    %v1101 = vmul.f32 %v1004, %v1004
    %v1102 = vmul.f32 %v1007, %v1007
    %v1103 = vmul.f32 %v1012, %v1012
    %v1104 = vmul.f32 %v1015, %v1015
    %v1105 = vmul.f32 %v1020, %v1020
    %v1106 = vmul.f32 %v1023, %v1023
    %v1107 = vmul.f32 %v1028, %v1028
    %v1108 = vmul.f32 %v1031, %v1031
    %v1109 = vmul.f32 %v1036, %v1036
    %v1110 = vmul.f32 %v1039, %v1039
    %v1111 = vmul.f32 %v1044, %v1044
    %v1112 = vmul.f32 %v1047, %v1047
    %v1113 = vmul.f32 %v1052, %v1052
    %v1114 = vmul.f32 %v1055, %v1055
    %v1115 = vmul.f32 %v1060, %v1060
    %v1116 = vmul.f32 %v1063, %v1063
    %v1117 = vmul.f32 %v1068, %v1068
    %v1118 = vmul.f32 %v1071, %v1071
    %v1119 = vmul.f32 %v1076, %v1076
    %v1120 = vmul.f32 %v1079, %v1079
    %v1121 = vmul.f32 %v1084, %v1084
    %v1122 = vmul.f32 %v1087, %v1087
    %1123 = vadd.xlane.f32.xlu0 %v1091
    %v1124 = vpop.xlane.xlu0 %1123
    %1125 = vadd.xlane.f32.xlu0 %v1092
    %v1126 = vpop.xlane.xlu0 %1125
    %1127 = vadd.xlane.f32.xlu0 %v1093
    %v1128 = vpop.xlane.xlu0 %1127
    %1129 = vadd.xlane.f32.xlu0 %v1094
    %v1130 = vpop.xlane.xlu0 %1129
    %1131 = vadd.xlane.f32.xlu0 %v1095
    %v1132 = vpop.xlane.xlu0 %1131
    %1133 = vadd.xlane.f32.xlu0 %v1096
    %v1134 = vpop.xlane.xlu0 %1133
    %1135 = vadd.xlane.f32.xlu0 %v1097
    %v1136 = vpop.xlane.xlu0 %1135
    %1137 = vadd.xlane.f32.xlu0 %v1098
    %v1138 = vpop.xlane.xlu0 %1137
    %1139 = vadd.xlane.f32.xlu0 %v1099
    %v1140 = vpop.xlane.xlu0 %1139
    %1141 = vadd.xlane.f32.xlu0 %v1100
    %v1142 = vpop.xlane.xlu0 %1141
    %1143 = vadd.xlane.f32.xlu0 %v1101
    %v1144 = vpop.xlane.xlu0 %1143
    %1145 = vadd.xlane.f32.xlu0 %v1102
    %v1146 = vpop.xlane.xlu0 %1145
    %1147 = vadd.xlane.f32.xlu0 %v1103
    %v1148 = vpop.xlane.xlu0 %1147
    %1149 = vadd.xlane.f32.xlu0 %v1104
    %v1150 = vpop.xlane.xlu0 %1149
    %1151 = vadd.xlane.f32.xlu0 %v1105
    %v1152 = vpop.xlane.xlu0 %1151
    %1153 = vadd.xlane.f32.xlu0 %v1106
    %v1154 = vpop.xlane.xlu0 %1153
    %1155 = vadd.xlane.f32.xlu0 %v1107
    %v1156 = vpop.xlane.xlu0 %1155
    %1157 = vadd.xlane.f32.xlu0 %v1108
    %v1158 = vpop.xlane.xlu0 %1157
    %1159 = vadd.xlane.f32.xlu0 %v1109
    %v1160 = vpop.xlane.xlu0 %1159
    %1161 = vadd.xlane.f32.xlu0 %v1110
    %v1162 = vpop.xlane.xlu0 %1161
    %1163 = vadd.xlane.f32.xlu0 %v1111
    %v1164 = vpop.xlane.xlu0 %1163
    %1165 = vadd.xlane.f32.xlu0 %v1112
    %v1166 = vpop.xlane.xlu0 %1165
    %1167 = vadd.xlane.f32.xlu0 %v1113
    %v1168 = vpop.xlane.xlu0 %1167
    %1169 = vadd.xlane.f32.xlu0 %v1114
    %v1170 = vpop.xlane.xlu0 %1169
    %1171 = vadd.xlane.f32.xlu0 %v1115
    %v1172 = vpop.xlane.xlu0 %1171
    %1173 = vadd.xlane.f32.xlu0 %v1116
    %v1174 = vpop.xlane.xlu0 %1173
    %1175 = vadd.xlane.f32.xlu0 %v1117
    %v1176 = vpop.xlane.xlu0 %1175
    %1177 = vadd.xlane.f32.xlu0 %v1118
    %v1178 = vpop.xlane.xlu0 %1177
    %1179 = vadd.xlane.f32.xlu0 %v1119
    %v1180 = vpop.xlane.xlu0 %1179
    %1181 = vadd.xlane.f32.xlu0 %v1120
    %v1182 = vpop.xlane.xlu0 %1181
    %1183 = vadd.xlane.f32.xlu0 %v1121
    %v1184 = vpop.xlane.xlu0 %1183
    %1185 = vadd.xlane.f32.xlu0 %v1122
    %v1186 = vpop.xlane.xlu0 %1185
    %v1187 = vmax.f32 %v1124, 1e-24
    %v1188 = vmax.f32 %v1126, 1e-24
    %v1189 = vmax.f32 %v1128, 1e-24
    %v1190 = vmax.f32 %v1130, 1e-24
    %v1191 = vmax.f32 %v1132, 1e-24
    %v1192 = vmax.f32 %v1134, 1e-24
    %v1193 = vmax.f32 %v1136, 1e-24
    %v1194 = vmax.f32 %v1138, 1e-24
    %v1195 = vmax.f32 %v1140, 1e-24
    %v1196 = vmax.f32 %v1142, 1e-24
    %v1197 = vmax.f32 %v1144, 1e-24
    %v1198 = vmax.f32 %v1146, 1e-24
    %v1199 = vmax.f32 %v1148, 1e-24
    %v1200 = vmax.f32 %v1150, 1e-24
    %v1201 = vmax.f32 %v1152, 1e-24
    %v1202 = vmax.f32 %v1154, 1e-24
    %v1203 = vmax.f32 %v1156, 1e-24
    %v1204 = vmax.f32 %v1158, 1e-24
    %v1205 = vmax.f32 %v1160, 1e-24
    %v1206 = vmax.f32 %v1162, 1e-24
    %v1207 = vmax.f32 %v1164, 1e-24
    %v1208 = vmax.f32 %v1166, 1e-24
    %v1209 = vmax.f32 %v1168, 1e-24
    %v1210 = vmax.f32 %v1170, 1e-24
    %v1211 = vmax.f32 %v1172, 1e-24
    %v1212 = vmax.f32 %v1174, 1e-24
    %v1213 = vmax.f32 %v1176, 1e-24
    %v1214 = vmax.f32 %v1178, 1e-24
    %v1215 = vmax.f32 %v1180, 1e-24
    %v1216 = vmax.f32 %v1182, 1e-24
    %v1217 = vmax.f32 %v1184, 1e-24
    %v1218 = vmax.f32 %v1186, 1e-24
    %v1219 = vrsqrt.pop %v1187
    %v1220 = vrsqrt.pop %v1188
    %v1221 = vrsqrt.pop %v1189
    %v1222 = vrsqrt.pop %v1190
    %v1223 = vrsqrt.pop %v1191
    %v1224 = vrsqrt.pop %v1192
    %v1225 = vrsqrt.pop %v1193
    %v1226 = vrsqrt.pop %v1194
    %v1227 = vrsqrt.pop %v1195
    %v1228 = vrsqrt.pop %v1196
    %v1229 = vrsqrt.pop %v1197
    %v1230 = vrsqrt.pop %v1198
    %v1231 = vrsqrt.pop %v1199
    %v1232 = vrsqrt.pop %v1200
    %v1233 = vrsqrt.pop %v1201
    %v1234 = vrsqrt.pop %v1202
    %v1235 = vrsqrt.pop %v1203
    %v1236 = vrsqrt.pop %v1204
    %v1237 = vrsqrt.pop %v1205
    %v1238 = vrsqrt.pop %v1206
    %v1239 = vrsqrt.pop %v1207
    %v1240 = vrsqrt.pop %v1208
    %v1241 = vrsqrt.pop %v1209
    %v1242 = vrsqrt.pop %v1210
    %v1243 = vrsqrt.pop %v1211
    %v1244 = vrsqrt.pop %v1212
    %v1245 = vrsqrt.pop %v1213
    %v1246 = vrsqrt.pop %v1214
    %v1247 = vrsqrt.pop %v1215
    %v1248 = vrsqrt.pop %v1216
    %v1249 = vrsqrt.pop %v1217
    %v1250 = vrsqrt.pop %v1218
    %v1251 = vstv %s1090
    %v1252 = vmul.f32 %v1251, %v1219
    %v1253 = vmul.f32 %v1251, %v1220
    %v1254 = vmul.f32 %v1251, %v1221
    %v1255 = vmul.f32 %v1251, %v1222
    %v1256 = vmul.f32 %v1251, %v1223
    %v1257 = vmul.f32 %v1251, %v1224
    %v1258 = vmul.f32 %v1251, %v1225
    %v1259 = vmul.f32 %v1251, %v1226
    %v1260 = vmul.f32 %v1251, %v1227
    %v1261 = vmul.f32 %v1251, %v1228
    %v1262 = vmul.f32 %v1251, %v1229
    %v1263 = vmul.f32 %v1251, %v1230
    %v1264 = vmul.f32 %v1251, %v1231
    %v1265 = vmul.f32 %v1251, %v1232
    %v1266 = vmul.f32 %v1251, %v1233
    %v1267 = vmul.f32 %v1251, %v1234
    %v1268 = vmul.f32 %v1251, %v1235
    %v1269 = vmul.f32 %v1251, %v1236
    %v1270 = vmul.f32 %v1251, %v1237
    %v1271 = vmul.f32 %v1251, %v1238
    %v1272 = vmul.f32 %v1251, %v1239
    %v1273 = vmul.f32 %v1251, %v1240
    %v1274 = vmul.f32 %v1251, %v1241
    %v1275 = vmul.f32 %v1251, %v1242
    %v1276 = vmul.f32 %v1251, %v1243
    %v1277 = vmul.f32 %v1251, %v1244
    %v1278 = vmul.f32 %v1251, %v1245
    %v1279 = vmul.f32 %v1251, %v1246
    %v1280 = vmul.f32 %v1251, %v1247
    %v1281 = vmul.f32 %v1251, %v1248
    %v1282 = vmul.f32 %v1251, %v1249
    %v1283 = vmul.f32 %v1251, %v1250
    %v1284 = vmul.f32 %v964, %v1252
    %v1285 = vmul.f32 %v967, %v1253
    %v1286 = vmul.f32 %v972, %v1254
    %v1287 = vmul.f32 %v975, %v1255
    %v1288 = vmul.f32 %v980, %v1256
    %v1289 = vmul.f32 %v983, %v1257
    %v1290 = vmul.f32 %v988, %v1258
    %v1291 = vmul.f32 %v991, %v1259
    %v1292 = vmul.f32 %v996, %v1260
    %v1293 = vmul.f32 %v999, %v1261
    %v1294 = vmul.f32 %v1004, %v1262
    %v1295 = vmul.f32 %v1007, %v1263
    %v1296 = vmul.f32 %v1012, %v1264
    %v1297 = vmul.f32 %v1015, %v1265
    %v1298 = vmul.f32 %v1020, %v1266
    %v1299 = vmul.f32 %v1023, %v1267
    %v1300 = vmul.f32 %v1028, %v1268
    %v1301 = vmul.f32 %v1031, %v1269
    %v1302 = vmul.f32 %v1036, %v1270
    %v1303 = vmul.f32 %v1039, %v1271
    %v1304 = vmul.f32 %v1044, %v1272
    %v1305 = vmul.f32 %v1047, %v1273
    %v1306 = vmul.f32 %v1052, %v1274
    %v1307 = vmul.f32 %v1055, %v1275
    %v1308 = vmul.f32 %v1060, %v1276
    %v1309 = vmul.f32 %v1063, %v1277
    %v1310 = vmul.f32 %v1068, %v1278
    %v1311 = vmul.f32 %v1071, %v1279
    %v1312 = vmul.f32 %v1076, %v1280
    %v1313 = vmul.f32 %v1079, %v1281
    %v1314 = vmul.f32 %v1084, %v1282
    %v1315 = vmul.f32 %v1087, %v1283
    %v1316 = vadd.f32 %v881, %v1284
    %v1317 = vadd.f32 %v882, %v1285
    %v1318 = vadd.f32 %v883, %v1286
    %v1319 = vadd.f32 %v884, %v1287
    %v1320 = vadd.f32 %v885, %v1288
    %v1321 = vadd.f32 %v886, %v1289
    %v1322 = vadd.f32 %v887, %v1290
    %v1323 = vadd.f32 %v888, %v1291
    %v1324 = vadd.f32 %v889, %v1292
    %v1325 = vadd.f32 %v890, %v1293
    %v1326 = vadd.f32 %v891, %v1294
    %v1327 = vadd.f32 %v892, %v1295
    %v1328 = vadd.f32 %v893, %v1296
    %v1329 = vadd.f32 %v894, %v1297
    %v1330 = vadd.f32 %v895, %v1298
    %v1331 = vadd.f32 %v896, %v1299
    %v1332 = vadd.f32 %v897, %v1300
    %v1333 = vadd.f32 %v898, %v1301
    %v1334 = vadd.f32 %v899, %v1302
    %v1335 = vadd.f32 %v900, %v1303
    %v1336 = vadd.f32 %v901, %v1304
    %v1337 = vadd.f32 %v902, %v1305
    %v1338 = vadd.f32 %v903, %v1306
    %v1339 = vadd.f32 %v904, %v1307
    %v1340 = vadd.f32 %v905, %v1308
    %v1341 = vadd.f32 %v906, %v1309
    %v1342 = vadd.f32 %v907, %v1310
    %v1343 = vadd.f32 %v908, %v1311
    %v1344 = vadd.f32 %v909, %v1312
    %v1345 = vadd.f32 %v910, %v1313
    %v1346 = vadd.f32 %v911, %v1314
    %v1347 = vadd.f32 %v912, %v1315
    %1348 = vst [vmem:[%s3] sm:$0xff] %v1316
    %1349 = vst [vmem:[%s3 + $0x8] sm:$0xff] %v1317
    %1350 = vst [vmem:[%s3 + $0x10] sm:$0xff] %v1318
    %1351 = vst [vmem:[%s3 + $0x18] sm:$0xff] %v1319
    %1352 = vst [vmem:[%s3 + $0x20] sm:$0xff] %v1320
    %1353 = vst [vmem:[%s3 + $0x28] sm:$0xff] %v1321
    %1354 = vst [vmem:[%s3 + $0x30] sm:$0xff] %v1322
    %1355 = vst [vmem:[%s3 + $0x38] sm:$0xff] %v1323
    %1356 = vst [vmem:[%s3 + $0x40] sm:$0xff] %v1324
    %1357 = vst [vmem:[%s3 + $0x48] sm:$0xff] %v1325
    %1358 = vst [vmem:[%s3 + $0x50] sm:$0xff] %v1326
    %1359 = vst [vmem:[%s3 + $0x58] sm:$0xff] %v1327
    %1360 = vst [vmem:[%s3 + $0x60] sm:$0xff] %v1328
    %1361 = vst [vmem:[%s3 + $0x68] sm:$0xff] %v1329
    %1362 = vst [vmem:[%s3 + $0x70] sm:$0xff] %v1330
    %1363 = vst [vmem:[%s3 + $0x78] sm:$0xff] %v1331
    %1364 = vst [vmem:[%s3 + $0x80] sm:$0xff] %v1332
    %1365 = vst [vmem:[%s3 + $0x88] sm:$0xff] %v1333
    %1366 = vst [vmem:[%s3 + $0x90] sm:$0xff] %v1334
    %1367 = vst [vmem:[%s3 + $0x98] sm:$0xff] %v1335
    %1368 = vst [vmem:[%s3 + $0xa0] sm:$0xff] %v1336
    %1369 = vst [vmem:[%s3 + $0xa8] sm:$0xff] %v1337
    %1370 = vst [vmem:[%s3 + $0xb0] sm:$0xff] %v1338
    %1371 = vst [vmem:[%s3 + $0xb8] sm:$0xff] %v1339
    %1372 = vst [vmem:[%s3 + $0xc0] sm:$0xff] %v1340
    %1373 = vst [vmem:[%s3 + $0xc8] sm:$0xff] %v1341
    %1374 = vst [vmem:[%s3 + $0xd0] sm:$0xff] %v1342
    %1375 = vst [vmem:[%s3 + $0xd8] sm:$0xff] %v1343
    %1376 = vst [vmem:[%s3 + $0xe0] sm:$0xff] %v1344
    %1377 = vst [vmem:[%s3 + $0xe8] sm:$0xff] %v1345
    %1378 = vst [vmem:[%s3 + $0xf0] sm:$0xff] %v1346
    %1379 = vst [vmem:[%s3 + $0xf8] sm:$0xff] %v1347
    // Predicated region
    $region18: #{session_conv.1} parent=1 // pred_check
      _
    $region19: #{session_conv.1} parent=1 // pred_check_branch
      %1381 = sbr.rel (0) target = $region21
    $region20: #{session_conv.1} parent=1 // pred_region
      _
    $region21: #{session_conv.1} parent=1 // pred_fallthru
      _
    // Predicated region
    $region22: #{session_conv.1} parent=1 // pred_check
      _
    $region23: #{session_conv.1} parent=1 // pred_check_branch
      %1383 = sbr.rel (0) target = $region25
    $region24: #{session_conv.1} parent=1 // pred_region
      _
    $region25: #{session_conv.1} parent=1 // pred_fallthru
      _
    %1384 = vsyncpa [#allocation3], 1

</llo_original>
